<compile_context>
chip_gen: v5e
topology: v5e:2x2
jax: 0.10.0
libtpu: 0.0.40
codegen_flags: <defaults>
</compile_context>

<pallas_src>
import functools

import jax
import jax.numpy as jnp
from jax.experimental import pallas as pl
from jax.experimental.pallas import tpu as pltpu


def _round_up(x, m):
    return ((x + m - 1) // m) * m


def _nbv_loss_kernel(pred_ref, tgt_ref, lam_ref, out_ref, acc_ref,
                     *, B, N, tb, tn, need_mask):
    i = pl.program_id(0)          # batch tile
    j = pl.program_id(1)          # feature tile (reduction axis, runs fastest)

    # Zero the vector accumulator at the start of each batch tile's reduction.
    @pl.when(j == 0)
    def _():
        acc_ref[...] = jnp.zeros_like(acc_ref)

    p = pred_ref[...].astype(jnp.float32)           # (tb, tn)
    t = tgt_ref[...].astype(jnp.float32)            # (tb, tn)
    lam = lam_ref[...].astype(jnp.float32)          # (1, tn)

    # Single transcendental per element: for t==1 the BCE term is -log(p),
    # for t==0 it is -log(1-p); anything else is masked to zero by the weight,
    # exactly like the original mask-based formulation.
    q = jnp.where(t == 1.0, p, 1.0 - p)
    neg_log_q = -jnp.maximum(jnp.log(q), -100.0)    # PyTorch BCELoss clamp

    lam_b = jnp.broadcast_to(lam, t.shape)
    # weight = lambda_for1 where t==1, lambda_for0(=1) where t==0, 0 otherwise.
    w = jnp.where(t == 1.0, lam_b, (t == 0.0).astype(jnp.float32))
    weighted = neg_log_q * w

    if need_mask:
        # Mask out-of-range (padded) rows/cols of the last tiles.
        rows = jax.lax.broadcasted_iota(jnp.int32, weighted.shape, 0) + i * tb
        cols = jax.lax.broadcasted_iota(jnp.int32, weighted.shape, 1) + j * tn
        valid = (rows < B) & (cols < N)
        weighted = jnp.where(valid, weighted, 0.0)

    # Cheap per-step VPU accumulate; no cross-lane reduce on the critical path.
    acc_ref[...] += weighted

    # Epilogue (once per batch tile): full reduce + scalar store.
    @pl.when(j == pl.num_programs(1) - 1)
    def _():
        out_ref[0, 0] = jnp.sum(acc_ref[...])


def nbv_loss(predictions, target, lambda_for1, *, tb=None, tn=None):
    """predictions, target: [B, N] float (any float dtype); lambda_for1: [N].

    Returns the scalar weighted BCE loss matching MyNBVLoss.forward.
    """
    B, N = predictions.shape
    itemsize = jnp.dtype(predictions.dtype).itemsize
    sub_align = max(8, 32 // max(itemsize, 1))      # 8 (f32) / 16 (bf16) / 32 (int8)

    # Feature (lane) tile: multiple of 128, capped.
    if tn is None:
        tn = min(_round_up(N, 128), 2048)
    # Batch (sublane) tile: keep each f32-equivalent input tile around ~2 MiB so
    # double-buffered inputs + the f32 accumulator comfortably fit VMEM on every
    # generation (incl. v7x's 64 MiB physical / 32 MiB scoped).
    if tb is None:
        budget_rows = (2 * 1024 * 1024) // (tn * 4)
        tb = max(sub_align, (budget_rows // sub_align) * sub_align)
        tb = min(tb, _round_up(B, sub_align))

    grid = (pl.cdiv(B, tb), pl.cdiv(N, tn))
    need_mask = (B % tb != 0) or (N % tn != 0)

    lam2d = lambda_for1.reshape(1, N).astype(jnp.float32)

    kernel = functools.partial(
        _nbv_loss_kernel, B=B, N=N, tb=tb, tn=tn, need_mask=need_mask)

    partials = pl.pallas_call(
        kernel,
        out_shape=jax.ShapeDtypeStruct((grid[0], 1), jnp.float32),
        grid_spec=pltpu.PrefetchScalarGridSpec(
            num_scalar_prefetch=0,
            grid=grid,
            in_specs=[
                pl.BlockSpec((tb, tn), lambda i, j: (i, j)),   # predictions
                pl.BlockSpec((tb, tn), lambda i, j: (i, j)),   # target
                pl.BlockSpec((1, tn), lambda i, j: (0, j)),    # lambda_for1
            ],
            out_specs=pl.BlockSpec((1, 1), lambda i, j: (i, 0),
                                   memory_space=pltpu.SMEM),
            scratch_shapes=[pltpu.VMEM((tb, tn), jnp.float32)],
        ),
        compiler_params=pltpu.CompilerParams(
            # batch tiles are independent (megacore-shardable on v7x);
            # feature axis is the sequential reduction.
            dimension_semantics=("parallel", "arbitrary"),
            vmem_limit_bytes=32 * 1024 * 1024,
        ),
    )(predictions, target, lam2d)

    # Tiny final reduction over per-batch-tile partials in plain JAX.
    return jnp.sum(partials)


def calculate_pos_weight(target):
    """Parameter setup mirroring MyNBVLoss.__init__ (plain JAX glue)."""
    num_pos = jnp.sum((target == 1.0).astype(jnp.float32), axis=0)
    num_neg = jnp.sum((target == 0.0).astype(jnp.float32), axis=0)
    pos_weight = num_neg / (num_pos + 1e-6)
    return pos_weight / 2.0


def _reference(predictions, target, lambda_for1):
    p = predictions.astype(jnp.float32)
    t = target.astype(jnp.float32)
    log_p = jnp.maximum(jnp.log(p), -100.0)
    log_1mp = jnp.maximum(jnp.log(1.0 - p), -100.0)
    loss = -(t * log_p + (1.0 - t) * log_1mp)
    loss0 = loss * (t == 0.0).astype(jnp.float32)
    loss1 = loss * (t == 1.0).astype(jnp.float32)
    return 1.0 * jnp.sum(loss0) + jnp.sum(loss1 * lambda_for1[None, :])


if __name__ == "__main__":
    key = jax.random.PRNGKey(0)

    # --- Test 1: tile-aligned small shapes --------------------------------
    k1, k2, k3, k4 = jax.random.split(key, 4)
    B, N = 16, 256
    predictions = jax.random.uniform(k1, (B, N), jnp.float32,
                                     minval=1e-4, maxval=1.0 - 1e-4)
    target = (jax.random.uniform(k2, (B, N)) > 0.7).astype(jnp.float32)
    lambda_for1 = calculate_pos_weight(target)

    out = jax.block_until_ready(nbv_loss(predictions, target, lambda_for1))
    ref = _reference(predictions, target, lambda_for1)
    assert jnp.allclose(out, ref, rtol=1e-4, atol=1e-2), (out, ref)

    # --- Test 2: non-tile-aligned shapes (exercises in-kernel padding mask) -
    B2, N2 = 20, 300
    predictions2 = jax.random.uniform(k3, (B2, N2), jnp.float32,
                                      minval=1e-4, maxval=1.0 - 1e-4)
    target2 = (jax.random.uniform(k4, (B2, N2)) > 0.6).astype(jnp.float32)
    lambda2 = calculate_pos_weight(target2)

    out2 = jax.block_until_ready(nbv_loss(predictions2, target2, lambda2))
    ref2 = _reference(predictions2, target2, lambda2)
    assert jnp.allclose(out2, ref2, rtol=1e-4, atol=1e-2), (out2, ref2)

    print("KERNEL_OK")
</pallas_src>

<mosaic_0001>
module attributes {stable_mosaic.version = 11 : i64} {
  func.func @_nbv_loss_kernel(%arg0: i32, %arg1: i32, %arg2: memref<16x256xf32, #tpu.memory_space<vmem>>, %arg3: memref<16x256xf32, #tpu.memory_space<vmem>>, %arg4: memref<1x256xf32, #tpu.memory_space<vmem>>, %arg5: memref<1x1xf32, #tpu.memory_space<smem>>, %arg6: memref<16x256xf32, #tpu.memory_space<vmem>>) attributes {dimension_semantics = [#tpu.dimension_semantics<parallel>, #tpu.dimension_semantics<arbitrary>], iteration_bounds = array<i64: 1, 1>, scalar_prefetch = 0 : i64, scratch_operands = 1 : i64, tpu.core_type = #tpu.core_type<tc>, window_params = [{transform_indices = @transform_0, window_bounds = array<i64: 16, 256>}, {transform_indices = @transform_1, window_bounds = array<i64: 16, 256>}, {transform_indices = @transform_2, window_bounds = array<i64: 1, 256>}, {transform_indices = @transform_3, window_bounds = array<i64: 1, 1>}]} {
    %c0_i32 = arith.constant 0 : i32
    %0 = arith.cmpi eq, %arg1, %c0_i32 : i32
    %1 = arith.extui %0 : i1 to i32
    %c0_i32_0 = arith.constant 0 : i32
    %2 = arith.cmpi ne, %1, %c0_i32_0 : i32
    scf.if %2 {
      %cst_17 = arith.constant 0.000000e+00 : f32
      %32 = vector.broadcast %cst_17 : f32 to vector<16x256xf32>
      %c0_18 = arith.constant 0 : index
      %c0_19 = arith.constant 0 : index
      %33 = vector.load %arg6[%c0_18, %c0_19] : memref<16x256xf32, #tpu.memory_space<vmem>>, vector<16x256xf32>
      tpu.vector_store %arg6[%c0_18, %c0_19], %32 {strides = array<i32>} : memref<16x256xf32, #tpu.memory_space<vmem>>, vector<16x256xf32>,
    } else {
    }
    %c0 = arith.constant 0 : index
    %c0_1 = arith.constant 0 : index
    %3 = vector.load %arg2[%c0, %c0_1] : memref<16x256xf32, #tpu.memory_space<vmem>>, vector<16x256xf32>
    %c0_2 = arith.constant 0 : index
    %c0_3 = arith.constant 0 : index
    %4 = vector.load %arg3[%c0_2, %c0_3] : memref<16x256xf32, #tpu.memory_space<vmem>>, vector<16x256xf32>
    %c0_4 = arith.constant 0 : index
    %c0_5 = arith.constant 0 : index
    %5 = vector.load %arg4[%c0_4, %c0_5] : memref<1x256xf32, #tpu.memory_space<vmem>>, vector<1x256xf32>
    %cst = arith.constant 1.000000e+00 : f32
    %6 = vector.broadcast %cst : f32 to vector<16x256xf32>
    %7 = arith.cmpf oeq, %4, %6 : vector<16x256xf32>
    %cst_6 = arith.constant 1.000000e+00 : f32
    %8 = vector.broadcast %cst_6 : f32 to vector<16x256xf32>
    %9 = arith.subf %8, %3 : vector<16x256xf32>
    %10 = arith.select %7, %3, %9 : vector<16x256xi1>, vector<16x256xf32>
    %11 = math.log %10 : vector<16x256xf32>
    %cst_7 = arith.constant -1.000000e+02 : f32
    %12 = vector.broadcast %cst_7 : f32 to vector<16x256xf32>
    %13 = arith.maximumf %11, %12 : vector<16x256xf32>
    %cst_8 = arith.constant 0.000000e+00 : f32
    %14 = vector.broadcast %cst_8 : f32 to vector<16x256xf32>
    %15 = arith.subf %14, %13 : vector<16x256xf32>
    %16 = vector.shape_cast %5 : vector<1x256xf32> to vector<1x256xf32>
    %17 = vector.broadcast %16 : vector<1x256xf32> to vector<16x256xf32>
    %cst_9 = arith.constant 1.000000e+00 : f32
    %18 = vector.broadcast %cst_9 : f32 to vector<16x256xf32>
    %19 = arith.cmpf oeq, %4, %18 : vector<16x256xf32>
    %cst_10 = arith.constant 0.000000e+00 : f32
    %20 = vector.broadcast %cst_10 : f32 to vector<16x256xf32>
    %21 = arith.cmpf oeq, %4, %20 : vector<16x256xf32>
    %22 = arith.extui %21 : vector<16x256xi1> to vector<16x256xi32>
    %23 = arith.sitofp %22 : vector<16x256xi32> to vector<16x256xf32>
    %24 = arith.select %19, %17, %23 : vector<16x256xi1>, vector<16x256xf32>
    %25 = arith.mulf %15, %24 : vector<16x256xf32>
    %c0_11 = arith.constant 0 : index
    %c0_12 = arith.constant 0 : index
    %26 = vector.load %arg6[%c0_11, %c0_12] : memref<16x256xf32, #tpu.memory_space<vmem>>, vector<16x256xf32>
    %27 = arith.addf %26, %25 : vector<16x256xf32>
    %c0_13 = arith.constant 0 : index
    %c0_14 = arith.constant 0 : index
    %28 = vector.load %arg6[%c0_13, %c0_14] : memref<16x256xf32, #tpu.memory_space<vmem>>, vector<16x256xf32>
    tpu.vector_store %arg6[%c0_13, %c0_14], %27 {strides = array<i32>} : memref<16x256xf32, #tpu.memory_space<vmem>>, vector<16x256xf32>,
    %c0_i32_15 = arith.constant 0 : i32
    %29 = arith.cmpi eq, %arg1, %c0_i32_15 : i32
    %30 = arith.extui %29 : i1 to i32
    %c0_i32_16 = arith.constant 0 : i32
    %31 = arith.cmpi ne, %30, %c0_i32_16 : i32
    scf.if %31 {
      %c0_17 = arith.constant 0 : index
      %c0_18 = arith.constant 0 : index
      %32 = vector.load %arg6[%c0_17, %c0_18] : memref<16x256xf32, #tpu.memory_space<vmem>>, vector<16x256xf32>
      %33 = vector.shape_cast %32 : vector<16x256xf32> to vector<1x16x256xf32>
      %cst_19 = arith.constant dense<0.000000e+00> : vector<1xf32>
      %34 = vector.multi_reduction <add>, %33, %cst_19 [1, 2] : vector<1x16x256xf32> to vector<1xf32>
      %35 = vector.shape_cast %34 : vector<1xf32> to vector<1x1x1xf32>
      %36 = vector.extract %35[0, 0, 0] : f32 from vector<1x1x1xf32>
      %c0_20 = arith.constant 0 : index
      %c0_21 = arith.constant 0 : index
      %37 = memref.load %arg5[%c0_20, %c0_21] : memref<1x1xf32, #tpu.memory_space<smem>>
      memref.store %36, %arg5[%c0_20, %c0_21] : memref<1x1xf32, #tpu.memory_space<smem>>
    } else {
    }
    return
  }
  func.func @transform_0(%arg0: i32, %arg1: i32) -> (i32, i32) {
    %c0_i32 = arith.constant 0 : i32
    return %arg0, %arg1 : i32, i32
  }
  func.func @transform_1(%arg0: i32, %arg1: i32) -> (i32, i32) {
    %c0_i32 = arith.constant 0 : i32
    return %arg0, %arg1 : i32, i32
  }
  func.func @transform_2(%arg0: i32, %arg1: i32) -> (i32, i32) {
    %c0_i32 = arith.constant 0 : i32
    %c0_i32_0 = arith.constant 0 : i32
    return %c0_i32, %arg1 : i32, i32
  }
  func.func @transform_3(%arg0: i32, %arg1: i32) -> (i32, i32) {
    %c0_i32 = arith.constant 0 : i32
    %c0_i32_0 = arith.constant 0 : i32
    return %arg0, %c0_i32 : i32, i32
  }
}

</mosaic_0001>

<llo_original>
// kernel: tpu_custom_call.1
$region0: #{tpu_custom_call.1}
  #allocation0 [shape = 'u32[]', space=smem, size = 0x4, offset = 0x4, fixed_abs, tag = 'smem constant byte address 0x4 - core index']
  #allocation1 [shape = 'u32[72,128]{1,0:T(1,128)}', space=vmem, size = 0x9000, scoped, tag = 'internal scratch']
  #allocation2 [shape = 'f32[16,256]{1,0:T(8,128)}', space=vmem, size = 0x4000, scoped, tag = 'scratch operand']
  %s0 = inlined_call_operand.hbm [shape: f32[16,256], index: 0, kind: input, shape index: {}]
  %s1 = inlined_call_operand.hbm [shape: f32[16,256], index: 1, kind: input, shape index: {}]
  %s2 = inlined_call_operand.hbm [shape: f32[1,256], index: 2, kind: input, shape index: {}]
  %s3 = inlined_call_operand.hbm [shape: f32[1,1], index: 3, kind: output, shape index: {}]
  %s4 = sld [smem:[#allocation0]]
  $region42: #{tpu_custom_call.1} parent=0
    _
  %s6 = ssub.s32 1, %s4
  %s7 = scalar_select 0, %s6, %s4
  $region1: #{tpu_custom_call.1} parent=0
    #allocation3 [shape = 'u8[16384]{0}', space=vmem, size = 0x4000, scoped, tag = 'input window, operand 0, single buffered']
    #allocation4 [shape = 's32[1]{0}', space=sflag, size = 0x4, scoped, tag = 'scoped memory for tpu_custom_call.1']
    #allocation5 [shape = 's32[1]{0}', space=sflag, size = 0x4, scoped, tag = 'scoped memory for tpu_custom_call.1']
    #allocation6 [shape = 'u8[16384]{0}', space=vmem, size = 0x4000, scoped, tag = 'input window, operand 1, single buffered']
    #allocation7 [shape = 's32[1]{0}', space=sflag, size = 0x4, scoped, tag = 'scoped memory for tpu_custom_call.1']
    #allocation8 [shape = 'u8[1024]{0}', space=vmem, size = 0x400, scoped, tag = 'input window, operand 2, single buffered']
    #allocation9 [shape = 'u8[512]{0}', space=smem, size = 0x200, scoped, tag = 'output window, operand 0, single buffered']
    %8 = vsyncpa [#allocation4], 0
    %9 = vsyncpa [#allocation7], 0
    %10 = vsyncpa [#allocation5], 0
    // Predicated region
    $region2: #{tpu_custom_call.1} parent=1 // pred_check
      _
    $region3: #{tpu_custom_call.1} parent=1 // pred_check_branch
      %12 = sbr.rel (0) target = $region5
    $region4: #{tpu_custom_call.1} parent=1 // pred_region
      %14 = vsyncadd [#allocation4], 0
      %s15 = sshll.u32 %s0, 4
      %s16 = int_to_ptr.hbm [resolvable:$true] %s15
      %s17 = sshll.u32 [#allocation3], 4
      %s18 = int_to_ptr.vmem [resolvable:$true] %s17
      %23 = dma.hbm_to_vmem [thread:$0]  %s16, 512, %s18, [#allocation4], 256, 256, 16
    $region5: #{tpu_custom_call.1} parent=1 // pred_fallthru
      _
    // Predicated region
    $region6: #{tpu_custom_call.1} parent=1 // pred_check
      _
    $region7: #{tpu_custom_call.1} parent=1 // pred_check_branch
      %25 = sbr.rel (0) target = $region9
    $region8: #{tpu_custom_call.1} parent=1 // pred_region
      %27 = vsyncadd [#allocation7], 0
      %s28 = sshll.u32 %s1, 4
      %s29 = int_to_ptr.hbm [resolvable:$true] %s28
      %s30 = sshll.u32 [#allocation6], 4
      %s31 = int_to_ptr.vmem [resolvable:$true] %s30
      %36 = dma.hbm_to_vmem [thread:$0]  %s29, 512, %s31, [#allocation7], 256, 256, 16
    $region9: #{tpu_custom_call.1} parent=1 // pred_fallthru
      _
    // Predicated region
    $region10: #{tpu_custom_call.1} parent=1 // pred_check
      _
    $region11: #{tpu_custom_call.1} parent=1 // pred_check_branch
      %38 = sbr.rel (0) target = $region13
    $region12: #{tpu_custom_call.1} parent=1 // pred_region
      %40 = vsyncadd [#allocation7], 0
      %s42 = sshll.u32 %s2, 4
      %s43 = int_to_ptr.hbm [resolvable:$true] %s42
      %s44 = sshll.u32 [#allocation8], 4
      %s45 = int_to_ptr.vmem [resolvable:$true] %s44
      %47 = dma.hbm_to_vmem [thread:$0]  %s43, 32, %s45, [#allocation7]
    $region13: #{tpu_custom_call.1} parent=1 // pred_fallthru
      _
    // Predicated region
    $region14: #{tpu_custom_call.1} parent=1 // pred_check
      _
    $region15: #{tpu_custom_call.1} parent=1 // pred_check_branch
      %49 = sbr.rel (0) target = $region17
    $region16: #{tpu_custom_call.1} parent=1 // pred_region
      %51 = dma.done [#allocation4], 512
    $region17: #{tpu_custom_call.1} parent=1 // pred_fallthru
      _
    // Predicated region
    $region18: #{tpu_custom_call.1} parent=1 // pred_check
      _
    $region19: #{tpu_custom_call.1} parent=1 // pred_check_branch
      %53 = sbr.rel (0) target = $region21
    $region20: #{tpu_custom_call.1} parent=1 // pred_region
      %55 = dma.done [#allocation7], 512
    $region21: #{tpu_custom_call.1} parent=1 // pred_fallthru
      _
    // Predicated region
    $region22: #{tpu_custom_call.1} parent=1 // pred_check
      _
    $region23: #{tpu_custom_call.1} parent=1 // pred_check_branch
      %57 = sbr.rel (0) target = $region25
    $region24: #{tpu_custom_call.1} parent=1 // pred_region
      %59 = dma.done [#allocation7], 32
    $region25: #{tpu_custom_call.1} parent=1 // pred_fallthru
      _
    %p60 = scmp.eq.s32.totalorder 0, 0
    // Predicated region
    $region26: #{tpu_custom_call.1} parent=1 // pred_check
      %p61 = pneg %p60
    $region27: #{tpu_custom_call.1} parent=1 // pred_check_branch
      %63 = sbr.rel (%p61) target = $region29
    $region28: #{tpu_custom_call.1} parent=1 // pred_region
      %64 = vst [vmem:[#allocation2] sm:$0xff] 0.0
      %65 = vst [vmem:[#allocation2 + $0x8] sm:$0xff] 0.0
      %66 = vst [vmem:[#allocation2 + $0x10] sm:$0xff] 0.0
      %67 = vst [vmem:[#allocation2 + $0x18] sm:$0xff] 0.0
    $region29: #{tpu_custom_call.1} parent=1 // pred_fallthru
      _
    %v68 = vld [vmem:[#allocation3] sm:$0xff]
    %v69 = vld [vmem:[#allocation3 + $0x8] sm:$0xff]
    %v70 = vld [vmem:[#allocation3 + $0x10] sm:$0xff]
    %v71 = vld [vmem:[#allocation3 + $0x18] sm:$0xff]
    %v72 = vld [vmem:[#allocation6] sm:$0xff]
    %v73 = vld [vmem:[#allocation6 + $0x8] sm:$0xff]
    %v74 = vld [vmem:[#allocation6 + $0x10] sm:$0xff]
    %v75 = vld [vmem:[#allocation6 + $0x18] sm:$0xff]
    %v76 = vld [vmem:[#allocation8] sm:$0x3]
    %vm77 = vcmp.eq.f32.partialorder %v72, 1.0
    %vm78 = vcmp.eq.f32.partialorder %v73, 1.0
    %vm79 = vcmp.eq.f32.partialorder %v74, 1.0
    %vm80 = vcmp.eq.f32.partialorder %v75, 1.0
    %v81 = vsub.f32 1.0, %v68
    %v82 = vsub.f32 1.0, %v69
    %v83 = vsub.f32 1.0, %v70
    %v84 = vsub.f32 1.0, %v71
    %v85 = vsel %vm77, %v68, %v81
    %v86 = vsel %vm78, %v69, %v82
    %v87 = vsel %vm79, %v70, %v83
    %v88 = vsel %vm80, %v71, %v84
    %v89 = vlog2.pop %v85
    %v90 = vmul.f32 %v89, 0.6931472
    %v91 = vlog2.pop %v86
    %v92 = vmul.f32 %v91, 0.6931472
    %v93 = vlog2.pop %v87
    %v94 = vmul.f32 %v93, 0.6931472
    %v95 = vlog2.pop %v88
    %v96 = vmul.f32 %v95, 0.6931472
    %v97 = vmax.f32 %v90, -100.0
    %v98 = vmax.f32 %v92, -100.0
    %v99 = vmax.f32 %v94, -100.0
    %v100 = vmax.f32 %v96, -100.0
    %v101 = vsub.f32 0.0, %v97
    %v102 = vsub.f32 0.0, %v98
    %v103 = vsub.f32 0.0, %v99
    %v104 = vsub.f32 0.0, %v100
    %v106 = vperm.slane %v76, 0
    %v107 = vperm.slane %v76, 1
    %vm110 = vcmp.eq.f32.partialorder %v72, 0.0
    %vm111 = vcmp.eq.f32.partialorder %v73, 0.0
    %vm112 = vcmp.eq.f32.partialorder %v74, 0.0
    %vm113 = vcmp.eq.f32.partialorder %v75, 0.0
    %v114 = vsel %vm110, 1, 0
    %v115 = vsel %vm111, 1, 0
    %v116 = vsel %vm112, 1, 0
    %v117 = vsel %vm113, 1, 0
    %v118 = vcvt.s32.f32 %v114
    %v119 = vcvt.s32.f32 %v115
    %v120 = vcvt.s32.f32 %v116
    %v121 = vcvt.s32.f32 %v117
    %v122 = vsel %vm77, %v106, %v118
    %v123 = vsel %vm78, %v107, %v119
    %v124 = vsel %vm79, %v106, %v120
    %v125 = vsel %vm80, %v107, %v121
    %v126 = vmul.f32 %v101, %v122
    %v127 = vmul.f32 %v102, %v123
    %v128 = vmul.f32 %v103, %v124
    %v129 = vmul.f32 %v104, %v125
    %v130 = vld [vmem:[#allocation2] sm:$0xff]
    %v131 = vld [vmem:[#allocation2 + $0x8] sm:$0xff]
    %v132 = vld [vmem:[#allocation2 + $0x10] sm:$0xff]
    %v133 = vld [vmem:[#allocation2 + $0x18] sm:$0xff]
    %v134 = vadd.f32 %v130, %v126
    %v135 = vadd.f32 %v131, %v127
    %v136 = vadd.f32 %v132, %v128
    %v137 = vadd.f32 %v133, %v129
    %138 = vst [vmem:[#allocation2] sm:$0xff] %v134
    %139 = vst [vmem:[#allocation2 + $0x8] sm:$0xff] %v135
    %140 = vst [vmem:[#allocation2 + $0x10] sm:$0xff] %v136
    %141 = vst [vmem:[#allocation2 + $0x18] sm:$0xff] %v137
    // Predicated region
    $region30: #{tpu_custom_call.1} parent=1 // pred_check
      %p142 = pneg %p60
    $region31: #{tpu_custom_call.1} parent=1 // pred_check_branch
      %144 = sbr.rel (%p142) target = $region33
    $region32: #{tpu_custom_call.1} parent=1 // pred_region
      %v145 = vld [vmem:[#allocation2] sm:$0xff]
      %v146 = vld [vmem:[#allocation2 + $0x8] sm:$0xff]
      %v147 = vld [vmem:[#allocation2 + $0x10] sm:$0xff]
      %v148 = vld [vmem:[#allocation2 + $0x18] sm:$0xff]
      %v149 = vadd.f32 %v145, %v146
      %v150 = vadd.f32 %v149, %v147
      %v151 = vadd.f32 %v150, %v148
      %152 = vadd.xlane.f32.xlu0 %v151
      %v153 = vpop.xlane.xlu0 %152
      %v154 = vrot.slane %v153, 4
      %v155 = vadd.f32 %v153, %v154
      %v156 = vrot.slane %v155, 2
      %v157 = vadd.f32 %v155, %v156
      %v158 = vrot.slane %v157, 1
      %v159 = vadd.f32 %v157, %v158
      %s160 = vtos %v159
      %s161 = scalar_lea.smem [#allocation9], 0
      %162 = sst [smem:[%s161]] %s160
    $region33: #{tpu_custom_call.1} parent=1 // pred_fallthru
      _
    // Predicated region
    $region34: #{tpu_custom_call.1} parent=1 // pred_check
      _
    $region35: #{tpu_custom_call.1} parent=1 // pred_check_branch
      %164 = sbr.rel (0) target = $region37
    $region36: #{tpu_custom_call.1} parent=1 // pred_region
      %166 = vsyncadd [#allocation5], 0
      %s168 = sshll.u32 %s3, 4
      %s169 = int_to_ptr.hbm [resolvable:$true] %s168
      %171 = dma.smem_to_hbm [#allocation9], 16, %s169, [#allocation5]
    $region37: #{tpu_custom_call.1} parent=1 // pred_fallthru
      _
    // Predicated region
    $region38: #{tpu_custom_call.1} parent=1 // pred_check
      _
    $region39: #{tpu_custom_call.1} parent=1 // pred_check_branch
      %173 = sbr.rel (0) target = $region41
    $region40: #{tpu_custom_call.1} parent=1 // pred_region
      %175 = dma.done [#allocation5], 16
    $region41: #{tpu_custom_call.1} parent=1 // pred_fallthru
      _
    %176 = sfence
    %177 = vsyncpa [#allocation4], 1
    %178 = vsyncpa [#allocation7], 1
    %179 = vsyncpa [#allocation5], 1

</llo_original>
